<compile_context>
chip_gen: v6e
topology: v6e:2x2x1
jax: 0.10.0
libtpu: 0.0.40
codegen_flags: <defaults>
</compile_context>

<pallas_src>
import functools
import math

import jax
import jax.numpy as jnp
from jax.experimental import pallas as pl
from jax.experimental.pallas import tpu as pltpu


def _label_smoothing_kernel(x_ref, tgt_ref, partial_ref, *,
                            n_rows, n_classes, block_b,
                            on_val, off_val, ent_const, ignore_index):
    """Writes the partial KL sum of one batch tile into a lane-dense block."""
    i = pl.program_id(0)
    x = x_ref[...].astype(jnp.float32)          # (TB, C) logits
    tgt = tgt_ref[...]                          # (TB, 1) int32 targets

    # Row validity: in-bounds (last tile may be padded) and not ignore_index.
    row_ids = jax.lax.broadcasted_iota(jnp.int32, (block_b, 1), 0) + i * block_b
    valid = (row_ids < n_rows) & (tgt != ignore_index)

    # Row-wise log-softmax statistics (no full logp materialization).
    m = jnp.max(x, axis=-1, keepdims=True)
    z = x - m
    lse = jnp.log(jnp.sum(jnp.exp(z), axis=-1, keepdims=True))    # (TB, 1)
    sum_z = jnp.sum(z, axis=-1, keepdims=True)                    # (TB, 1)

    # z at the target column: iota-compare + select + row-sum (no scatter).
    cols = jax.lax.broadcasted_iota(jnp.int32, (block_b, n_classes), 1)
    z_tgt = jnp.sum(jnp.where(cols == tgt, z, jnp.float32(0.0)),
                    axis=-1, keepdims=True)                       # (TB, 1)

    # Closed form of sum_j t_j * (log t_j - logp_j) per valid row.
    cross = (jnp.float32(off_val) * (sum_z - jnp.float32(n_classes) * lse)
             + jnp.float32(on_val - off_val) * (z_tgt - lse))
    row_term = jnp.float32(ent_const) - cross
    row_term = jnp.where(valid, row_term, jnp.float32(0.0))

    partial = jnp.sum(row_term)
    partial_ref[...] = jnp.broadcast_to(partial, partial_ref.shape).astype(jnp.float32)


def _choose_block_b(n_rows, n_classes, itemsize, vmem_budget_bytes=4 << 20):
    """Pick a batch tile so one logits buffer stays within ~4 MiB (fits the
    scoped-VMEM defaults of v5e/v6e/v7x even with double buffering)."""
    tb = max(1, vmem_budget_bytes // max(1, n_classes * itemsize))
    if tb >= n_rows:
        return n_rows
    tb = max(16, (tb // 16) * 16)   # multiple of 16 -> valid for f32 and bf16 tiles
    return min(tb, n_rows)


def label_smoothing_loss(output, target, smoothing=0.1, ignore_index=-100,
                         ignore_mask=None, reduction="mean", block_b=None):
    """output: (B, C) float logits (f32 or bf16); target: (B,) int -> scalar loss."""
    # TODO(synk): only ignore_mask=None and reduction='mean' are implemented.
    assert ignore_mask is None and reduction == "mean"
    B, C = output.shape
    tgt2d = target.astype(jnp.int32).reshape(B, 1)

    if block_b is None:
        block_b = _choose_block_b(B, C, output.dtype.itemsize)
    block_b = min(int(block_b), B)
    num_tiles = int(pl.cdiv(B, block_b))

    smoothing = float(smoothing)
    off_val = smoothing / (C - 1)
    on_val = 1.0 - smoothing
    # Static entropy term of the smoothed one-hot (hoisted to Python time).
    ent_const = on_val * math.log(on_val)
    if off_val > 0.0:
        ent_const += (C - 1) * off_val * math.log(off_val)

    kernel = functools.partial(
        _label_smoothing_kernel,
        n_rows=B, n_classes=C, block_b=block_b,
        on_val=on_val, off_val=off_val, ent_const=ent_const,
        ignore_index=int(ignore_index))

    partials = pl.pallas_call(
        kernel,
        out_shape=jax.ShapeDtypeStruct((num_tiles, 8, 128), jnp.float32),
        grid=(num_tiles,),
        in_specs=[
            pl.BlockSpec((block_b, C), lambda i: (i, 0)),
            pl.BlockSpec((block_b, 1), lambda i: (i, 0)),
        ],
        out_specs=pl.BlockSpec((1, 8, 128), lambda i: (i, 0, 0)),
        compiler_params=pltpu.CompilerParams(
            dimension_semantics=("parallel",)),
    )(output, tgt2d)

    # Tiny final reduction (num_tiles scalars) + mean-normalization + abs in JAX.
    inv_count = 1.0 / float(B * C)
    return jnp.abs(jnp.sum(partials[:, 0, 0]) * jnp.float32(inv_count))


def _reference(output, target, smoothing=0.1, ignore_index=-100):
    """Pure-JAX reference mirroring the PyTorch module."""
    B, C = output.shape
    logp = jax.nn.log_softmax(output.astype(jnp.float32), axis=-1)
    safe_tgt = jnp.where(target == ignore_index, 0, target)
    t = jnp.full((B, C), smoothing / (C - 1), jnp.float32)
    t = t.at[jnp.arange(B), safe_tgt].set(1.0 - smoothing)
    t = jnp.where((target == ignore_index)[:, None], 0.0, t)
    safe_t = jnp.where(t > 0, t, 1.0)
    term = jnp.where(t > 0, t * (jnp.log(safe_t) - logp), 0.0)
    return jnp.abs(jnp.mean(term))


if __name__ == "__main__":
    key = jax.random.PRNGKey(0)

    # --- Small single-tile case (batch=8, n_classes=32), with an ignored row. ---
    B, C = 8, 32
    k1, k2 = jax.random.split(key)
    output = jax.random.normal(k1, (B, C), dtype=jnp.float32)
    target = jax.random.randint(k2, (B,), 0, C, dtype=jnp.int32)
    target = target.at[3].set(-100)  # exercise the ignore_index path

    loss = jax.block_until_ready(label_smoothing_loss(output, target))
    ref = _reference(output, target)
    assert jnp.allclose(loss, ref, atol=1e-5, rtol=1e-5), (loss, ref)

    # --- Multi-tile case with a partial last tile (B=40, TB=16 -> 3 tiles). ---
    B2, C2 = 40, 128
    k3, k4 = jax.random.split(k1)
    out2 = jax.random.normal(k3, (B2, C2), dtype=jnp.float32)
    tgt2 = jax.random.randint(k4, (B2,), 0, C2, dtype=jnp.int32)
    tgt2 = tgt2.at[0].set(-100)
    loss2 = jax.block_until_ready(label_smoothing_loss(out2, tgt2, block_b=16))
    ref2 = _reference(out2, tgt2)
    assert jnp.allclose(loss2, ref2, atol=1e-5, rtol=1e-5), (loss2, ref2)

    # --- bf16 logits accepted directly (kernel upcasts to f32 internally). ---
    out_bf16 = out2.astype(jnp.bfloat16)
    loss3 = jax.block_until_ready(label_smoothing_loss(out_bf16, tgt2, block_b=16))
    ref3 = _reference(out_bf16.astype(jnp.float32), tgt2)
    assert jnp.allclose(loss3, ref3, atol=1e-3, rtol=1e-3), (loss3, ref3)

    print("KERNEL_OK")
</pallas_src>

<mosaic_0001>
module attributes {stable_mosaic.version = 11 : i64} {
  func.func @_label_smoothing_kernel(%arg0: i32, %arg1: memref<8x32xf32, #tpu.memory_space<vmem>>, %arg2: memref<8x1xi32, #tpu.memory_space<vmem>>, %arg3: memref<1x8x128xf32, #tpu.memory_space<vmem>>) attributes {dimension_semantics = [#tpu.dimension_semantics<parallel>], iteration_bounds = array<i64: 1>, scalar_prefetch = 0 : i64, scratch_operands = 0 : i64, tpu.core_type = #tpu.core_type<tc>, window_params = [{transform_indices = @transform_0, window_bounds = array<i64: 8, 32>}, {transform_indices = @transform_1, window_bounds = array<i64: 8, 1>}, {transform_indices = @transform_2, window_bounds = array<i64: 1, 8, 128>}]} {
    %c0 = arith.constant 0 : index
    %c0_0 = arith.constant 0 : index
    %0 = vector.load %arg1[%c0, %c0_0] : memref<8x32xf32, #tpu.memory_space<vmem>>, vector<8x32xf32>
    %c0_1 = arith.constant 0 : index
    %c0_2 = arith.constant 0 : index
    %1 = vector.load %arg2[%c0_1, %c0_2] : memref<8x1xi32, #tpu.memory_space<vmem>>, vector<8x1xi32>
    %2 = tpu.iota {dimensions = array<i32: 0>} : vector<8x1xi32>
    %c8_i32 = arith.constant 8 : i32
    %3 = arith.muli %arg0, %c8_i32 : i32
    %4 = vector.broadcast %3 : i32 to vector<8x1xi32>
    %5 = arith.addi %2, %4 : vector<8x1xi32>
    %c8_i32_3 = arith.constant 8 : i32
    %6 = vector.broadcast %c8_i32_3 : i32 to vector<8x1xi32>
    %7 = arith.cmpi slt, %5, %6 : vector<8x1xi32>
    %c-100_i32 = arith.constant -100 : i32
    %8 = vector.broadcast %c-100_i32 : i32 to vector<8x1xi32>
    %9 = arith.cmpi ne, %1, %8 : vector<8x1xi32>
    %10 = arith.andi %7, %9 : vector<8x1xi1>
    %cst = arith.constant dense<0xFF800000> : vector<8xf32>
    %11 = vector.multi_reduction <maximumf>, %0, %cst [1] : vector<8x32xf32> to vector<8xf32>
    %12 = vector.shape_cast %11 : vector<8xf32> to vector<8x1xf32>
    %13 = vector.broadcast %12 : vector<8x1xf32> to vector<8x32xf32>
    %14 = arith.subf %0, %13 : vector<8x32xf32>
    %15 = math.exp %14 : vector<8x32xf32>
    %cst_4 = arith.constant dense<0.000000e+00> : vector<8xf32>
    %16 = vector.multi_reduction <add>, %15, %cst_4 [1] : vector<8x32xf32> to vector<8xf32>
    %17 = vector.shape_cast %16 : vector<8xf32> to vector<8x1xf32>
    %18 = math.log %17 : vector<8x1xf32>
    %cst_5 = arith.constant dense<0.000000e+00> : vector<8xf32>
    %19 = vector.multi_reduction <add>, %14, %cst_5 [1] : vector<8x32xf32> to vector<8xf32>
    %20 = vector.shape_cast %19 : vector<8xf32> to vector<8x1xf32>
    %21 = tpu.iota {dimensions = array<i32: 1>} : vector<8x32xi32>
    %22 = vector.broadcast %1 : vector<8x1xi32> to vector<8x32xi32>
    %23 = arith.cmpi eq, %21, %22 : vector<8x32xi32>
    %cst_6 = arith.constant 0.000000e+00 : f32
    %24 = vector.broadcast %cst_6 : f32 to vector<8x32xf32>
    %25 = arith.select %23, %14, %24 : vector<8x32xi1>, vector<8x32xf32>
    %cst_7 = arith.constant dense<0.000000e+00> : vector<8xf32>
    %26 = vector.multi_reduction <add>, %25, %cst_7 [1] : vector<8x32xf32> to vector<8xf32>
    %27 = vector.shape_cast %26 : vector<8xf32> to vector<8x1xf32>
    %cst_8 = arith.constant 3.200000e+01 : f32
    %28 = vector.broadcast %cst_8 : f32 to vector<8x1xf32>
    %29 = arith.mulf %28, %18 : vector<8x1xf32>
    %30 = arith.subf %20, %29 : vector<8x1xf32>
    %cst_9 = arith.constant 0.0032258064 : f32
    %31 = vector.broadcast %cst_9 : f32 to vector<8x1xf32>
    %32 = arith.mulf %31, %30 : vector<8x1xf32>
    %33 = arith.subf %27, %18 : vector<8x1xf32>
    %cst_10 = arith.constant 0.896774172 : f32
    %34 = vector.broadcast %cst_10 : f32 to vector<8x1xf32>
    %35 = arith.mulf %34, %33 : vector<8x1xf32>
    %36 = arith.addf %32, %35 : vector<8x1xf32>
    %cst_11 = arith.constant -0.668481708 : f32
    %37 = vector.broadcast %cst_11 : f32 to vector<8x1xf32>
    %38 = arith.subf %37, %36 : vector<8x1xf32>
    %cst_12 = arith.constant 0.000000e+00 : f32
    %39 = vector.broadcast %cst_12 : f32 to vector<8x1xf32>
    %40 = arith.select %10, %38, %39 : vector<8x1xi1>, vector<8x1xf32>
    %41 = vector.shape_cast %40 : vector<8x1xf32> to vector<1x8x1xf32>
    %cst_13 = arith.constant dense<0.000000e+00> : vector<1xf32>
    %42 = vector.multi_reduction <add>, %41, %cst_13 [1, 2] : vector<1x8x1xf32> to vector<1xf32>
    %43 = vector.shape_cast %42 : vector<1xf32> to vector<1x1x1xf32>
    %44 = vector.extract %43[0, 0, 0] : f32 from vector<1x1x1xf32>
    %45 = vector.broadcast %44 : f32 to vector<1x8x128xf32>
    %c0_14 = arith.constant 0 : index
    %c0_15 = arith.constant 0 : index
    %c0_16 = arith.constant 0 : index
    %46 = vector.load %arg3[%c0_14, %c0_15, %c0_16] : memref<1x8x128xf32, #tpu.memory_space<vmem>>, vector<1x8x128xf32>
    tpu.vector_store %arg3[%c0_14, %c0_15, %c0_16], %45 {strides = array<i32>} : memref<1x8x128xf32, #tpu.memory_space<vmem>>, vector<1x8x128xf32>,
    return
  }
  func.func @transform_0(%arg0: i32) -> (i32, i32) {
    %c0_i32 = arith.constant 0 : i32
    %c0_i32_0 = arith.constant 0 : i32
    return %arg0, %c0_i32 : i32, i32
  }
  func.func @transform_1(%arg0: i32) -> (i32, i32) {
    %c0_i32 = arith.constant 0 : i32
    %c0_i32_0 = arith.constant 0 : i32
    return %arg0, %c0_i32 : i32, i32
  }
  func.func @transform_2(%arg0: i32) -> (i32, i32, i32) {
    %c0_i32 = arith.constant 0 : i32
    %c0_i32_0 = arith.constant 0 : i32
    %c0_i32_1 = arith.constant 0 : i32
    return %arg0, %c0_i32, %c0_i32_0 : i32, i32, i32
  }
}

</mosaic_0001>

<llo_original>
// kernel: tpu_custom_call.1
$region0: #{tpu_custom_call.1}
  #allocation0 [shape = 'u32[]', space=smem, size = 0x4, offset = 0x4, fixed_abs, tag = 'smem constant byte address 0x4 - core index']
  #allocation1 [shape = 'u32[144,128]{1,0:T(1,128)}', space=vmem, size = 0x12000, scoped, tag = 'internal scratch']
  %s0 = inlined_call_operand.vmem [shape: f32[8,32], index: 0, kind: input, shape index: {}]
  %s1 = inlined_call_operand.vmem [shape: s32[8,1], index: 1, kind: input, shape index: {}]
  %s2 = inlined_call_operand.hbm [shape: f32[1,8,128], index: 2, kind: output, shape index: {}]
  %s3 = sld [smem:[#allocation0]]
  $region18: #{tpu_custom_call.1} parent=0
    _
  %s5 = ssub.s32 1, %s3
  %s6 = scalar_select 0, %s5, %s3
  $region1: #{tpu_custom_call.1} parent=0
    #allocation2 [shape = 'u8[4096]{0}', space=vmem, size = 0x1000, scoped, tag = 'output window, operand 0, single buffered']
    #allocation3 [shape = 's32[1]{0}', space=sflag, size = 0x4, scoped, tag = 'scoped memory for tpu_custom_call.1']
    %7 = vsyncpa [#allocation3], 0
    // Predicated region
    $region2: #{tpu_custom_call.1} parent=1 // pred_check
      _
    $region3: #{tpu_custom_call.1} parent=1 // pred_check_branch
      %9 = sbr.rel (0) target = $region5
    $region4: #{tpu_custom_call.1} parent=1 // pred_region
      _
    $region5: #{tpu_custom_call.1} parent=1 // pred_fallthru
      _
    // Predicated region
    $region6: #{tpu_custom_call.1} parent=1 // pred_check
      _
    $region7: #{tpu_custom_call.1} parent=1 // pred_check_branch
      %11 = sbr.rel (0) target = $region9
    $region8: #{tpu_custom_call.1} parent=1 // pred_region
      _
    $region9: #{tpu_custom_call.1} parent=1 // pred_fallthru
      _
    %v12 = vld [vmem:[%s0] sm:$0xff]
    %v13 = vld [vmem:[%s1] sm:$0xff]
    %v14 = vlaneseq
    %v15 = vshrl.u32 %v14, 7
    %s16 = smul.u32 0, 8
    %v17 = vstv %s16
    %v18 = vadd.s32 %v15, %v17
    %vm19 = vcmp.lt.s32.totalorder %v18, 8
    %vm20 = vcmp.ne.s32.totalorder %v13, 4294967196
    %vm21 = vmand %vm19, %vm20
    %vm22 = vcmask 261120
    %v23 = vsel %vm22, %v12, -inf
    %24 = vmax.xlane.f32.xlu0 %v23
    %v25 = vpop.xlane.xlu0 %24
    %v26 = vsub.f32 %v12, %v25
    %v27 = vmul.f32 %v26, 1.442695
    %v28 = vpow.pop %v27
    %v29 = vsel %vm22, %v28, 0.0
    %30 = vadd.xlane.f32.xlu0 %v29
    %v31 = vpop.xlane.xlu0 %30
    %v32 = vlog2.pop %v31
    %v33 = vmul.f32 %v32, 0.6931472
    %v34 = vsel %vm22, %v26, 0.0
    %35 = vadd.xlane.f32.xlu0 %v34
    %v36 = vpop.xlane.xlu0 %35
    %v37 = vlaneseq
    %v38 = vand.u32 %v37, 127
    %39 = vset.pattern.permute.xlu0 0
    %40 = vperm.xlu0 %39, %v13
    %v41 = vpop.permute.xlu0 %40
    %vm42 = vcmp.eq.s32.totalorder %v38, %v41
    %v43 = vsel %vm42, %v26, 0.0
    %v44 = vsel %vm22, %v43, 0.0
    %45 = vadd.xlane.f32.xlu0 %v44
    %v46 = vpop.xlane.xlu0 %45
    %v47 = vmul.f32 %v33, 32.0
    %v48 = vsub.f32 %v36, %v47
    %v49 = vmul.f32 %v48, 0.0032258064
    %v50 = vsub.f32 %v46, %v33
    %v51 = vmul.f32 %v50, 0.8967742
    %v52 = vadd.f32 %v49, %v51
    %v53 = vsub.f32 -0.6684817, %v52
    %v54 = vsel %vm21, %v53, 0.0
    %vm55 = vcmask 7168
    %v56 = vsel %vm55, %v54, 0.0
    %57 = vadd.xlane.f32.xlu0 %v56
    %v58 = vpop.xlane.xlu0 %57
    %v59 = vrot.slane %v58, 4
    %v60 = vadd.f32 %v58, %v59
    %v61 = vrot.slane %v60, 2
    %v62 = vadd.f32 %v60, %v61
    %v63 = vrot.slane %v62, 1
    %v64 = vadd.f32 %v62, %v63
    %s65 = vtos %v64
    %v66 = vstv %s65
    %67 = vst [vmem:[#allocation2] sm:$0xff] %v66
    // Predicated region
    $region10: #{tpu_custom_call.1} parent=1 // pred_check
      _
    $region11: #{tpu_custom_call.1} parent=1 // pred_check_branch
      %69 = sbr.rel (0) target = $region13
    $region12: #{tpu_custom_call.1} parent=1 // pred_region
      %s71 = ssub.s32 128, 128
      %72 = vsyncadd [#allocation3], %s71
      %s74 = sshll.u32 [#allocation2], 4
      %s75 = int_to_ptr.vmem [resolvable:$true] %s74
      %77 = dma.vmem_to_hbm [thread:$0]  %s75, 128, %s2, [#allocation3]
    $region13: #{tpu_custom_call.1} parent=1 // pred_fallthru
      _
    // Predicated region
    $region14: #{tpu_custom_call.1} parent=1 // pred_check
      _
    $region15: #{tpu_custom_call.1} parent=1 // pred_check_branch
      %79 = sbr.rel (0) target = $region17
    $region16: #{tpu_custom_call.1} parent=1 // pred_region
      %80 = dma.done [#allocation3], 128
    $region17: #{tpu_custom_call.1} parent=1 // pred_fallthru
      _
    %81 = vsyncpa [#allocation3], 1

</llo_original>
